<compile_context>
chip_gen: v6e
topology: v6e:2x2x1
jax: 0.10.0
libtpu: 0.0.40
codegen_flags: <defaults>
</compile_context>

<pallas_src>
import functools

import jax
import jax.numpy as jnp
import numpy as np
from jax.experimental import pallas as pl
from jax.experimental.pallas import tpu as pltpu

NEG_PAD = -1e9  # bias value placed on padded atom lanes -> exp underflows to 0


def _rainbow_kernel(num_actions, atoms_pad,
                    x_ref,
                    w1_ref, b1_ref,
                    w2_ref, b2_ref,
                    wva1_ref, bva1_ref,
                    wv2_ref, bv2_ref,
                    wa2_ref, ba2_ref,
                    out_ref):
    f32 = jnp.float32
    bf16 = jnp.bfloat16
    x = x_ref[...]

    # Feature trunk: linear1 -> relu -> linear2 -> relu (bf16 MXU, f32 accumulate).
    h = jnp.dot(x.astype(bf16), w1_ref[...], preferred_element_type=f32) + b1_ref[...]
    h = jnp.maximum(h, 0.0)
    h = jnp.dot(h.astype(bf16), w2_ref[...], preferred_element_type=f32) + b2_ref[...]
    h = jnp.maximum(h, 0.0)

    # Fused value||advantage first noisy layer: one 128-lane-dense MXU call.
    # h2[:, :64] = relu(h @ wv1 + bv1) ; h2[:, 64:] = relu(h @ wa1 + ba1)
    h2 = jnp.dot(h.astype(bf16), wva1_ref[...], preferred_element_type=f32) + bva1_ref[...]
    h2 = jnp.maximum(h2, 0.0).astype(bf16)

    # Second noisy layer: two dense dots (no structural-zero weight DMA).
    hv = h2[:, :64]                                                   # value hidden
    ha = h2[:, 64:]                                                   # advantage hidden
    zv = jnp.dot(hv, wv2_ref[...], preferred_element_type=f32) + bv2_ref[...]   # [bt, P]
    za = jnp.dot(ha, wa2_ref[...], preferred_element_type=f32) + ba2_ref[...]   # [bt, A*P]

    P = atoms_pad
    adv = [za[:, i * P:(i + 1) * P] for i in range(num_actions)]      # lane-group views
    adv_sum = adv[0]
    for i in range(1, num_actions):
        adv_sum = adv_sum + adv[i]
    # Dueling combine base, hoisted out of the per-action softmax loop.
    base = zv - adv_sum * (1.0 / num_actions)

    # Per-action numerically-stable softmax over (padded) atoms.  Pad lanes carry
    # logits == NEG_PAD -> exp underflows to exactly 0 -> no denominator leak.
    probs = []
    for i in range(num_actions):
        logits = base + adv[i]                                        # [bt, P]
        m = jnp.max(logits, axis=-1, keepdims=True)
        e = jnp.exp(logits - m)
        s = jnp.sum(e, axis=-1, keepdims=True)
        probs.append(e / s)     # exact divide: kernel is DMA-bound, exactness is free

    # Single lane-dense store of the whole [bt, num_actions * P] slab.
    out_ref[...] = jnp.concatenate(probs, axis=1)


def rainbow_dqn_forward(x, packed, num_actions, num_atoms, atoms_pad=128,
                        batch_tile=256, slice_atoms=True):
    B, num_inputs = x.shape
    P, A = atoms_pad, num_actions

    # Batch tiling: one grid step per batch tile; pad B up to a tile multiple.
    if B <= batch_tile:
        bt, Bp = B, B
    else:
        bt = batch_tile
        Bp = pl.cdiv(B, bt) * bt
    if Bp != B:
        x = jnp.pad(x, ((0, Bp - B), (0, 0)))
    grid = (Bp // bt,)

    weights = [
        packed["w1"], packed["b1"],
        packed["w2"], packed["b2"],
        packed["wva1"], packed["bva1"],
        packed["wv2"], packed["bv2"],
        packed["wa2"], packed["ba2"],
    ]
    # Weights/biases use constant index_maps -> DMA'd into VMEM once per call and
    # kept resident across all batch tiles.
    weight_specs = [pl.BlockSpec(w.shape, lambda i: (0, 0)) for w in weights]
    in_specs = [pl.BlockSpec((bt, num_inputs), lambda i: (i, 0))] + weight_specs
    out_spec = pl.BlockSpec((bt, A * P), lambda i: (i, 0))

    weight_bytes = sum(int(np.prod(w.shape)) * w.dtype.itemsize for w in weights)
    cost = pl.CostEstimate(
        flops=2 * Bp * (num_inputs * 32 + 32 * 64 + 64 * 128 + 64 * P + 64 * A * P),
        transcendentals=Bp * A * P,
        bytes_accessed=weight_bytes + Bp * num_inputs * 4 + Bp * A * P * 4,
    )

    kernel = functools.partial(_rainbow_kernel, num_actions, atoms_pad)
    out_padded = pl.pallas_call(
        kernel,
        grid=grid,
        out_shape=jax.ShapeDtypeStruct((Bp, A * P), jnp.float32),
        in_specs=in_specs,
        out_specs=out_spec,
        compiler_params=pltpu.CompilerParams(
            # Batch tiles are independent -> v7x shards them across its 2 TCs.
            dimension_semantics=("parallel",)),
        cost_estimate=cost,
    )(x, *weights)

    out = out_padded[:B].reshape(B, A, P)
    if slice_atoms:
        # Wrapper-side layout plumbing: un-pad the lane-dense slab.  Set
        # slice_atoms=False if the consumer accepts the padded [B, A, 128] slab
        # (saves an extra non-lane-dense HBM copy after the kernel).
        out = out[:, :, :num_atoms]
    return out


# ------------------------- parameter construction -------------------------

def _linear_params(key, fan_in, fan_out):
    """PyTorch nn.Linear-style uniform init, returned as (W[in,out], b[1,out])."""
    kw, kb = jax.random.split(key)
    bound = 1.0 / np.sqrt(fan_in)
    w = jax.random.uniform(kw, (fan_in, fan_out), jnp.float32, -bound, bound)
    b = jax.random.uniform(kb, (1, fan_out), jnp.float32, -bound, bound)
    return w, b


def _noisy_linear_params(key, fan_in, fan_out, std_init=0.4):
    """NoisyLinear effective params: (mu + sigma * eps) with deterministic eps."""
    kmu_w, kmu_b, keps_w, keps_b = jax.random.split(key, 4)
    mu_range = 1.0 / np.sqrt(fan_in)
    w_mu = jax.random.uniform(kmu_w, (fan_in, fan_out), jnp.float32, -mu_range, mu_range)
    b_mu = jax.random.uniform(kmu_b, (1, fan_out), jnp.float32, -mu_range, mu_range)
    w_sigma = jnp.full((fan_in, fan_out), std_init / np.sqrt(fan_in), jnp.float32)
    b_sigma = jnp.full((1, fan_out), std_init / np.sqrt(fan_out), jnp.float32)
    eps_w = jax.random.normal(keps_w, (fan_in, fan_out), jnp.float32)
    eps_b = jax.random.normal(keps_b, (1, fan_out), jnp.float32)
    return w_mu + w_sigma * eps_w, b_mu + b_sigma * eps_b


def make_params(key, num_inputs, num_actions, num_atoms):
    keys = jax.random.split(key, 6)
    w1, b1 = _linear_params(keys[0], num_inputs, 32)
    w2, b2 = _linear_params(keys[1], 32, 64)
    wv1, bv1 = _noisy_linear_params(keys[2], 64, 64)
    wv2, bv2 = _noisy_linear_params(keys[3], 64, num_atoms)
    wa1, ba1 = _noisy_linear_params(keys[4], 64, 64)
    wa2, ba2 = _noisy_linear_params(keys[5], 64, num_atoms * num_actions)
    return dict(w1=w1, b1=b1, w2=w2, b2=b2,
                wv1=wv1, bv1=bv1, wv2=wv2, bv2=bv2,
                wa1=wa1, ba1=ba1, wa2=wa2, ba2=ba2)


def pack_params(p, num_actions, num_atoms, atoms_pad=128):
    """Pack weights for the kernel: bf16 weights, f32 biases.

      w1  [32,32] bf16,  b1 [1,32] f32
      w2  [32,64] bf16,  b2 [1,64] f32
      wva1 [64,128] bf16 = [wv1 | wa1],  bva1 [1,128] f32 = [bv1 | ba1]
      wv2  [64,P]   bf16 value head, atoms padded with zeros
      wa2  [64,A*P] bf16 advantage head, per-action atom blocks padded with zeros
      bv2 / ba2     f32 biases with NEG_PAD on pad lanes (softmax kill)
    """
    P, A = atoms_pad, num_actions
    bf16 = jnp.bfloat16
    hidden = p["wv1"].shape[0]  # 64

    wva1 = jnp.concatenate([p["wv1"], p["wa1"]], axis=1).astype(bf16)   # [64, 128]
    bva1 = jnp.concatenate([p["bv1"], p["ba1"]], axis=1)                # [1, 128] f32

    # Value head padded to P atoms.
    wv2p = jnp.zeros((hidden, P), jnp.float32).at[:, :num_atoms].set(p["wv2"]).astype(bf16)
    bv2p = jnp.full((1, P), NEG_PAD, jnp.float32).at[:, :num_atoms].set(p["bv2"])

    # Advantage head: per-action atom blocks padded to P atoms.
    wa2 = p["wa2"].reshape(hidden, A, num_atoms)
    wa2p = (jnp.zeros((hidden, A, P), jnp.float32)
            .at[:, :, :num_atoms].set(wa2)
            .reshape(hidden, A * P).astype(bf16))
    ba2 = p["ba2"].reshape(1, A, num_atoms)
    ba2p = (jnp.full((1, A, P), NEG_PAD, jnp.float32)
            .at[:, :, :num_atoms].set(ba2)
            .reshape(1, A * P))

    return dict(w1=p["w1"].astype(bf16), b1=p["b1"],
                w2=p["w2"].astype(bf16), b2=p["b2"],
                wva1=wva1, bva1=bva1,
                wv2=wv2p, bv2=bv2p,
                wa2=wa2p, ba2=ba2p)


def rainbow_dqn_reference(x, p, num_actions, num_atoms):
    """Pure-JAX reference mirroring the PyTorch forward (unfused f32 params)."""
    B = x.shape[0]
    h = jax.nn.relu(x @ p["w1"] + p["b1"])
    h = jax.nn.relu(h @ p["w2"] + p["b2"])
    v = jax.nn.relu(h @ p["wv1"] + p["bv1"])
    v = (v @ p["wv2"] + p["bv2"]).reshape(B, 1, num_atoms)
    a = jax.nn.relu(h @ p["wa1"] + p["ba1"])
    a = (a @ p["wa2"] + p["ba2"]).reshape(B, num_actions, num_atoms)
    logits = v + a - a.mean(axis=1, keepdims=True)
    probs = jax.nn.softmax(logits.reshape(-1, num_atoms), axis=-1)
    return probs.reshape(B, num_actions, num_atoms)


if __name__ == "__main__":
    # Small, module-consistent shapes (batch matches the spec's batch_size=32).
    B, NUM_INPUTS, NUM_ACTIONS, NUM_ATOMS = 32, 32, 4, 51
    ATOMS_PAD = 128  # lane-aligned per-action atom width inside the kernel

    key = jax.random.PRNGKey(0)
    kx, kp = jax.random.split(key)
    x = jax.random.normal(kx, (B, NUM_INPUTS), jnp.float32)
    params = make_params(kp, NUM_INPUTS, NUM_ACTIONS, NUM_ATOMS)
    packed = pack_params(params, NUM_ACTIONS, NUM_ATOMS, ATOMS_PAD)

    out = rainbow_dqn_forward(x, packed, NUM_ACTIONS, NUM_ATOMS, ATOMS_PAD)
    out = jax.block_until_ready(out)

    ref = rainbow_dqn_reference(x, params, NUM_ACTIONS, NUM_ATOMS)
    # Tolerance accounts for bf16 weights / bf16 matmul operands (accumulation is
    # f32); the softmax normalization itself uses an exact divide.
    np.testing.assert_allclose(np.asarray(out), np.asarray(ref), rtol=5e-2, atol=5e-3)
    # Distribution sanity: softmax over (unpadded) atoms sums to 1 to f32 precision.
    np.testing.assert_allclose(np.asarray(out).sum(-1), np.ones((B, NUM_ACTIONS)),
                               rtol=1e-5, atol=1e-5)

    print("KERNEL_OK")
</pallas_src>

<mosaic_0001>
module attributes {stable_mosaic.version = 11 : i64} {
  func.func @_rainbow_kernel(%arg0: i32, %arg1: memref<32x32xf32, #tpu.memory_space<vmem>>, %arg2: memref<32x32xbf16, #tpu.memory_space<vmem>>, %arg3: memref<1x32xf32, #tpu.memory_space<vmem>>, %arg4: memref<32x64xbf16, #tpu.memory_space<vmem>>, %arg5: memref<1x64xf32, #tpu.memory_space<vmem>>, %arg6: memref<64x128xbf16, #tpu.memory_space<vmem>>, %arg7: memref<1x128xf32, #tpu.memory_space<vmem>>, %arg8: memref<64x128xbf16, #tpu.memory_space<vmem>>, %arg9: memref<1x128xf32, #tpu.memory_space<vmem>>, %arg10: memref<64x512xbf16, #tpu.memory_space<vmem>>, %arg11: memref<1x512xf32, #tpu.memory_space<vmem>>, %arg12: memref<32x512xf32, #tpu.memory_space<vmem>>) attributes {dimension_semantics = [#tpu.dimension_semantics<parallel>], iteration_bounds = array<i64: 1>, scalar_prefetch = 0 : i64, scratch_operands = 0 : i64, tpu.core_type = #tpu.core_type<tc>, window_params = [{transform_indices = @transform_0, window_bounds = array<i64: 32, 32>}, {pipeline_mode = #tpu.pipeline_mode<synchronous>, transform_indices = @transform_1, window_bounds = array<i64: 32, 32>}, {pipeline_mode = #tpu.pipeline_mode<synchronous>, transform_indices = @transform_2, window_bounds = array<i64: 1, 32>}, {pipeline_mode = #tpu.pipeline_mode<synchronous>, transform_indices = @transform_3, window_bounds = array<i64: 32, 64>}, {pipeline_mode = #tpu.pipeline_mode<synchronous>, transform_indices = @transform_4, window_bounds = array<i64: 1, 64>}, {pipeline_mode = #tpu.pipeline_mode<synchronous>, transform_indices = @transform_5, window_bounds = array<i64: 64, 128>}, {pipeline_mode = #tpu.pipeline_mode<synchronous>, transform_indices = @transform_6, window_bounds = array<i64: 1, 128>}, {pipeline_mode = #tpu.pipeline_mode<synchronous>, transform_indices = @transform_7, window_bounds = array<i64: 64, 128>}, {pipeline_mode = #tpu.pipeline_mode<synchronous>, transform_indices = @transform_8, window_bounds = array<i64: 1, 128>}, {pipeline_mode = #tpu.pipeline_mode<synchronous>, transform_indices = @transform_9, window_bounds = array<i64: 64, 512>}, {pipeline_mode = #tpu.pipeline_mode<synchronous>, transform_indices = @transform_10, window_bounds = array<i64: 1, 512>}, {transform_indices = @transform_11, window_bounds = array<i64: 32, 512>}]} {
    %c0 = arith.constant 0 : index
    %c0_0 = arith.constant 0 : index
    %0 = vector.load %arg1[%c0, %c0_0] : memref<32x32xf32, #tpu.memory_space<vmem>>, vector<32x32xf32>
    %1 = arith.truncf %0 : vector<32x32xf32> to vector<32x32xbf16>
    %c0_1 = arith.constant 0 : index
    %c0_2 = arith.constant 0 : index
    %2 = vector.load %arg2[%c0_1, %c0_2] : memref<32x32xbf16, #tpu.memory_space<vmem>>, vector<32x32xbf16>
    %cst = arith.constant dense<0.000000e+00> : vector<32x32xf32>
    %3 = tpu.matmul %1, %2, %cst {dimension_numbers = #tpu.dot_dimension_numbers<[1], [0], [0], [1], [0, 0, 1, 1], [], []>} : vector<32x32xbf16>, vector<32x32xbf16>, vector<32x32xf32> -> vector<32x32xf32>
    %c0_3 = arith.constant 0 : index
    %c0_4 = arith.constant 0 : index
    %4 = vector.load %arg3[%c0_3, %c0_4] : memref<1x32xf32, #tpu.memory_space<vmem>>, vector<1x32xf32>
    %5 = vector.broadcast %4 : vector<1x32xf32> to vector<32x32xf32>
    %6 = arith.addf %3, %5 : vector<32x32xf32>
    %cst_5 = arith.constant 0.000000e+00 : f32
    %7 = vector.broadcast %cst_5 : f32 to vector<32x32xf32>
    %8 = arith.maximumf %6, %7 : vector<32x32xf32>
    %9 = arith.truncf %8 : vector<32x32xf32> to vector<32x32xbf16>
    %c0_6 = arith.constant 0 : index
    %c0_7 = arith.constant 0 : index
    %10 = vector.load %arg4[%c0_6, %c0_7] : memref<32x64xbf16, #tpu.memory_space<vmem>>, vector<32x64xbf16>
    %cst_8 = arith.constant dense<0.000000e+00> : vector<32x64xf32>
    %11 = tpu.matmul %9, %10, %cst_8 {dimension_numbers = #tpu.dot_dimension_numbers<[1], [0], [0], [1], [0, 0, 1, 1], [], []>} : vector<32x32xbf16>, vector<32x64xbf16>, vector<32x64xf32> -> vector<32x64xf32>
    %c0_9 = arith.constant 0 : index
    %c0_10 = arith.constant 0 : index
    %12 = vector.load %arg5[%c0_9, %c0_10] : memref<1x64xf32, #tpu.memory_space<vmem>>, vector<1x64xf32>
    %13 = vector.broadcast %12 : vector<1x64xf32> to vector<32x64xf32>
    %14 = arith.addf %11, %13 : vector<32x64xf32>
    %cst_11 = arith.constant 0.000000e+00 : f32
    %15 = vector.broadcast %cst_11 : f32 to vector<32x64xf32>
    %16 = arith.maximumf %14, %15 : vector<32x64xf32>
    %17 = arith.truncf %16 : vector<32x64xf32> to vector<32x64xbf16>
    %c0_12 = arith.constant 0 : index
    %c0_13 = arith.constant 0 : index
    %18 = vector.load %arg6[%c0_12, %c0_13] : memref<64x128xbf16, #tpu.memory_space<vmem>>, vector<64x128xbf16>
    %cst_14 = arith.constant dense<0.000000e+00> : vector<32x128xf32>
    %19 = tpu.matmul %17, %18, %cst_14 {dimension_numbers = #tpu.dot_dimension_numbers<[1], [0], [0], [1], [0, 0, 1, 1], [], []>} : vector<32x64xbf16>, vector<64x128xbf16>, vector<32x128xf32> -> vector<32x128xf32>
    %c0_15 = arith.constant 0 : index
    %c0_16 = arith.constant 0 : index
    %20 = vector.load %arg7[%c0_15, %c0_16] : memref<1x128xf32, #tpu.memory_space<vmem>>, vector<1x128xf32>
    %21 = vector.broadcast %20 : vector<1x128xf32> to vector<32x128xf32>
    %22 = arith.addf %19, %21 : vector<32x128xf32>
    %cst_17 = arith.constant 0.000000e+00 : f32
    %23 = vector.broadcast %cst_17 : f32 to vector<32x128xf32>
    %24 = arith.maximumf %22, %23 : vector<32x128xf32>
    %25 = arith.truncf %24 : vector<32x128xf32> to vector<32x128xbf16>
    %26 = vector.extract_strided_slice %25 {offsets = [0, 0], sizes = [32, 64], strides = [1, 1]} : vector<32x128xbf16> to vector<32x64xbf16>
    %27 = vector.extract_strided_slice %25 {offsets = [0, 64], sizes = [32, 64], strides = [1, 1]} : vector<32x128xbf16> to vector<32x64xbf16>
    %c0_18 = arith.constant 0 : index
    %c0_19 = arith.constant 0 : index
    %28 = vector.load %arg8[%c0_18, %c0_19] : memref<64x128xbf16, #tpu.memory_space<vmem>>, vector<64x128xbf16>
    %cst_20 = arith.constant dense<0.000000e+00> : vector<32x128xf32>
    %29 = tpu.matmul %26, %28, %cst_20 {dimension_numbers = #tpu.dot_dimension_numbers<[1], [0], [0], [1], [0, 0, 1, 1], [], []>} : vector<32x64xbf16>, vector<64x128xbf16>, vector<32x128xf32> -> vector<32x128xf32>
    %c0_21 = arith.constant 0 : index
    %c0_22 = arith.constant 0 : index
    %30 = vector.load %arg9[%c0_21, %c0_22] : memref<1x128xf32, #tpu.memory_space<vmem>>, vector<1x128xf32>
    %31 = vector.broadcast %30 : vector<1x128xf32> to vector<32x128xf32>
    %32 = arith.addf %29, %31 : vector<32x128xf32>
    %c0_23 = arith.constant 0 : index
    %c0_24 = arith.constant 0 : index
    %33 = vector.load %arg10[%c0_23, %c0_24] : memref<64x512xbf16, #tpu.memory_space<vmem>>, vector<64x512xbf16>
    %cst_25 = arith.constant dense<0.000000e+00> : vector<32x512xf32>
    %34 = tpu.matmul %27, %33, %cst_25 {dimension_numbers = #tpu.dot_dimension_numbers<[1], [0], [0], [1], [0, 0, 1, 1], [], []>} : vector<32x64xbf16>, vector<64x512xbf16>, vector<32x512xf32> -> vector<32x512xf32>
    %c0_26 = arith.constant 0 : index
    %c0_27 = arith.constant 0 : index
    %35 = vector.load %arg11[%c0_26, %c0_27] : memref<1x512xf32, #tpu.memory_space<vmem>>, vector<1x512xf32>
    %36 = vector.broadcast %35 : vector<1x512xf32> to vector<32x512xf32>
    %37 = arith.addf %34, %36 : vector<32x512xf32>
    %38 = vector.extract_strided_slice %37 {offsets = [0, 0], sizes = [32, 128], strides = [1, 1]} : vector<32x512xf32> to vector<32x128xf32>
    %39 = vector.extract_strided_slice %37 {offsets = [0, 128], sizes = [32, 128], strides = [1, 1]} : vector<32x512xf32> to vector<32x128xf32>
    %40 = vector.extract_strided_slice %37 {offsets = [0, 256], sizes = [32, 128], strides = [1, 1]} : vector<32x512xf32> to vector<32x128xf32>
    %41 = vector.extract_strided_slice %37 {offsets = [0, 384], sizes = [32, 128], strides = [1, 1]} : vector<32x512xf32> to vector<32x128xf32>
    %42 = arith.addf %38, %39 : vector<32x128xf32>
    %43 = arith.addf %42, %40 : vector<32x128xf32>
    %44 = arith.addf %43, %41 : vector<32x128xf32>
    %cst_28 = arith.constant 2.500000e-01 : f32
    %45 = vector.broadcast %cst_28 : f32 to vector<32x128xf32>
    %46 = arith.mulf %44, %45 : vector<32x128xf32>
    %47 = arith.subf %32, %46 : vector<32x128xf32>
    %48 = arith.addf %47, %38 : vector<32x128xf32>
    %cst_29 = arith.constant dense<0xFF800000> : vector<32xf32>
    %49 = vector.multi_reduction <maximumf>, %48, %cst_29 [1] : vector<32x128xf32> to vector<32xf32>
    %50 = vector.shape_cast %49 : vector<32xf32> to vector<32x1xf32>
    %51 = vector.broadcast %50 : vector<32x1xf32> to vector<32x128xf32>
    %52 = arith.subf %48, %51 : vector<32x128xf32>
    %53 = math.exp %52 : vector<32x128xf32>
    %cst_30 = arith.constant dense<0.000000e+00> : vector<32xf32>
    %54 = vector.multi_reduction <add>, %53, %cst_30 [1] : vector<32x128xf32> to vector<32xf32>
    %55 = vector.shape_cast %54 : vector<32xf32> to vector<32x1xf32>
    %56 = vector.broadcast %55 : vector<32x1xf32> to vector<32x128xf32>
    %57 = arith.divf %53, %56 : vector<32x128xf32>
    %58 = arith.addf %47, %39 : vector<32x128xf32>
    %cst_31 = arith.constant dense<0xFF800000> : vector<32xf32>
    %59 = vector.multi_reduction <maximumf>, %58, %cst_31 [1] : vector<32x128xf32> to vector<32xf32>
    %60 = vector.shape_cast %59 : vector<32xf32> to vector<32x1xf32>
    %61 = vector.broadcast %60 : vector<32x1xf32> to vector<32x128xf32>
    %62 = arith.subf %58, %61 : vector<32x128xf32>
    %63 = math.exp %62 : vector<32x128xf32>
    %cst_32 = arith.constant dense<0.000000e+00> : vector<32xf32>
    %64 = vector.multi_reduction <add>, %63, %cst_32 [1] : vector<32x128xf32> to vector<32xf32>
    %65 = vector.shape_cast %64 : vector<32xf32> to vector<32x1xf32>
    %66 = vector.broadcast %65 : vector<32x1xf32> to vector<32x128xf32>
    %67 = arith.divf %63, %66 : vector<32x128xf32>
    %68 = arith.addf %47, %40 : vector<32x128xf32>
    %cst_33 = arith.constant dense<0xFF800000> : vector<32xf32>
    %69 = vector.multi_reduction <maximumf>, %68, %cst_33 [1] : vector<32x128xf32> to vector<32xf32>
    %70 = vector.shape_cast %69 : vector<32xf32> to vector<32x1xf32>
    %71 = vector.broadcast %70 : vector<32x1xf32> to vector<32x128xf32>
    %72 = arith.subf %68, %71 : vector<32x128xf32>
    %73 = math.exp %72 : vector<32x128xf32>
    %cst_34 = arith.constant dense<0.000000e+00> : vector<32xf32>
    %74 = vector.multi_reduction <add>, %73, %cst_34 [1] : vector<32x128xf32> to vector<32xf32>
    %75 = vector.shape_cast %74 : vector<32xf32> to vector<32x1xf32>
    %76 = vector.broadcast %75 : vector<32x1xf32> to vector<32x128xf32>
    %77 = arith.divf %73, %76 : vector<32x128xf32>
    %78 = arith.addf %47, %41 : vector<32x128xf32>
    %cst_35 = arith.constant dense<0xFF800000> : vector<32xf32>
    %79 = vector.multi_reduction <maximumf>, %78, %cst_35 [1] : vector<32x128xf32> to vector<32xf32>
    %80 = vector.shape_cast %79 : vector<32xf32> to vector<32x1xf32>
    %81 = vector.broadcast %80 : vector<32x1xf32> to vector<32x128xf32>
    %82 = arith.subf %78, %81 : vector<32x128xf32>
    %83 = math.exp %82 : vector<32x128xf32>
    %cst_36 = arith.constant dense<0.000000e+00> : vector<32xf32>
    %84 = vector.multi_reduction <add>, %83, %cst_36 [1] : vector<32x128xf32> to vector<32xf32>
    %85 = vector.shape_cast %84 : vector<32xf32> to vector<32x1xf32>
    %86 = vector.broadcast %85 : vector<32x1xf32> to vector<32x128xf32>
    %87 = arith.divf %83, %86 : vector<32x128xf32>
    %88 = tpu.concatenate %57, %67, %77, %87 in 1 : vector<32x128xf32>, vector<32x128xf32>, vector<32x128xf32>, vector<32x128xf32> -> vector<32x512xf32>
    %c0_37 = arith.constant 0 : index
    %c0_38 = arith.constant 0 : index
    %89 = vector.load %arg12[%c0_37, %c0_38] : memref<32x512xf32, #tpu.memory_space<vmem>>, vector<32x512xf32>
    tpu.vector_store %arg12[%c0_37, %c0_38], %88 {strides = array<i32>} : memref<32x512xf32, #tpu.memory_space<vmem>>, vector<32x512xf32>,
    return
  }
  func.func @transform_0(%arg0: i32) -> (i32, i32) {
    %c0_i32 = arith.constant 0 : i32
    %c0_i32_0 = arith.constant 0 : i32
    return %arg0, %c0_i32 : i32, i32
  }
  func.func @transform_1(%arg0: i32) -> (i32, i32) {
    %c0_i32 = arith.constant 0 : i32
    %c0_i32_0 = arith.constant 0 : i32
    %c0_i32_1 = arith.constant 0 : i32
    return %c0_i32, %c0_i32_0 : i32, i32
  }
  func.func @transform_2(%arg0: i32) -> (i32, i32) {
    %c0_i32 = arith.constant 0 : i32
    %c0_i32_0 = arith.constant 0 : i32
    %c0_i32_1 = arith.constant 0 : i32
    return %c0_i32, %c0_i32_0 : i32, i32
  }
  func.func @transform_3(%arg0: i32) -> (i32, i32) {
    %c0_i32 = arith.constant 0 : i32
    %c0_i32_0 = arith.constant 0 : i32
    %c0_i32_1 = arith.constant 0 : i32
    return %c0_i32, %c0_i32_0 : i32, i32
  }
  func.func @transform_4(%arg0: i32) -> (i32, i32) {
    %c0_i32 = arith.constant 0 : i32
    %c0_i32_0 = arith.constant 0 : i32
    %c0_i32_1 = arith.constant 0 : i32
    return %c0_i32, %c0_i32_0 : i32, i32
  }
  func.func @transform_5(%arg0: i32) -> (i32, i32) {
    %c0_i32 = arith.constant 0 : i32
    %c0_i32_0 = arith.constant 0 : i32
    %c0_i32_1 = arith.constant 0 : i32
    return %c0_i32, %c0_i32_0 : i32, i32
  }
  func.func @transform_6(%arg0: i32) -> (i32, i32) {
    %c0_i32 = arith.constant 0 : i32
    %c0_i32_0 = arith.constant 0 : i32
    %c0_i32_1 = arith.constant 0 : i32
    return %c0_i32, %c0_i32_0 : i32, i32
  }
  func.func @transform_7(%arg0: i32) -> (i32, i32) {
    %c0_i32 = arith.constant 0 : i32
    %c0_i32_0 = arith.constant 0 : i32
    %c0_i32_1 = arith.constant 0 : i32
    return %c0_i32, %c0_i32_0 : i32, i32
  }
  func.func @transform_8(%arg0: i32) -> (i32, i32) {
    %c0_i32 = arith.constant 0 : i32
    %c0_i32_0 = arith.constant 0 : i32
    %c0_i32_1 = arith.constant 0 : i32
    return %c0_i32, %c0_i32_0 : i32, i32
  }
  func.func @transform_9(%arg0: i32) -> (i32, i32) {
    %c0_i32 = arith.constant 0 : i32
    %c0_i32_0 = arith.constant 0 : i32
    %c0_i32_1 = arith.constant 0 : i32
    return %c0_i32, %c0_i32_0 : i32, i32
  }
  func.func @transform_10(%arg0: i32) -> (i32, i32) {
    %c0_i32 = arith.constant 0 : i32
    %c0_i32_0 = arith.constant 0 : i32
    %c0_i32_1 = arith.constant 0 : i32
    return %c0_i32, %c0_i32_0 : i32, i32
  }
  func.func @transform_11(%arg0: i32) -> (i32, i32) {
    %c0_i32 = arith.constant 0 : i32
    %c0_i32_0 = arith.constant 0 : i32
    return %arg0, %c0_i32 : i32, i32
  }
}

</mosaic_0001>

<llo_original>
// kernel: tpu_custom_call.1
$region0: #{tpu_custom_call.1}
  #allocation0 [shape = 'u32[]', space=smem, size = 0x4, offset = 0x4, fixed_abs, tag = 'smem constant byte address 0x4 - core index']
  #allocation1 [shape = 'u32[144,128]{1,0:T(1,128)}', space=vmem, size = 0x12000, scoped, tag = 'internal scratch']
  %s0 = inlined_call_operand.hbm [shape: f32[32,32], index: 0, kind: input, shape index: {}]
  %s1 = inlined_call_operand.hbm [shape: bf16[32,32], index: 1, kind: input, shape index: {}]
  %s2 = inlined_call_operand.vmem [shape: f32[1,32], index: 2, kind: input, shape index: {}]
  %s3 = inlined_call_operand.hbm [shape: bf16[32,64], index: 3, kind: input, shape index: {}]
  %s4 = inlined_call_operand.vmem [shape: f32[1,64], index: 4, kind: input, shape index: {}]
  %s5 = inlined_call_operand.hbm [shape: bf16[64,128], index: 5, kind: input, shape index: {}]
  %s6 = inlined_call_operand.vmem [shape: f32[1,128], index: 6, kind: input, shape index: {}]
  %s7 = inlined_call_operand.hbm [shape: bf16[64,128], index: 7, kind: input, shape index: {}]
  %s8 = inlined_call_operand.vmem [shape: f32[1,128], index: 8, kind: input, shape index: {}]
  %s9 = inlined_call_operand.hbm [shape: bf16[64,512], index: 9, kind: input, shape index: {}]
  %s10 = inlined_call_operand.vmem [shape: f32[1,512], index: 10, kind: input, shape index: {}]
  %s11 = inlined_call_operand.hbm [shape: f32[32,512], index: 11, kind: output, shape index: {}]
  %s12 = sld [smem:[#allocation0]]
  $region78: #{tpu_custom_call.1} parent=0
    _
  %s14 = ssub.s32 1, %s12
  %s15 = scalar_select 0, %s14, %s12
  $region1: #{tpu_custom_call.1} parent=0
    #allocation2 [shape = 'u8[16384]{0}', space=vmem, size = 0x4000, scoped, tag = 'input window, operand 0, single buffered']
    #allocation3 [shape = 's32[1]{0}', space=sflag, size = 0x4, scoped, tag = 'scoped memory for tpu_custom_call.1']
    #allocation4 [shape = 's32[1]{0}', space=sflag, size = 0x4, scoped, tag = 'scoped memory for tpu_custom_call.1']
    #allocation5 [shape = 'u8[8192]{0}', space=vmem, size = 0x2000, scoped, tag = 'input window, operand 1, single buffered']
    #allocation6 [shape = 's32[1]{0}', space=sflag, size = 0x4, scoped, tag = 'scoped memory for tpu_custom_call.1']
    #allocation7 [shape = 'u8[8192]{0}', space=vmem, size = 0x2000, scoped, tag = 'input window, operand 3, single buffered']
    #allocation8 [shape = 'u8[16384]{0}', space=vmem, size = 0x4000, scoped, tag = 'input window, operand 5, single buffered']
    #allocation9 [shape = 's32[1]{0}', space=sflag, size = 0x4, scoped, tag = 'scoped memory for tpu_custom_call.1']
    #allocation10 [shape = 'u8[16384]{0}', space=vmem, size = 0x4000, scoped, tag = 'input window, operand 7, single buffered']
    #allocation11 [shape = 'u8[65536]{0}', space=vmem, size = 0x10000, scoped, tag = 'input window, operand 9, single buffered']
    #allocation12 [shape = 's32[1]{0}', space=sflag, size = 0x4, scoped, tag = 'scoped memory for tpu_custom_call.1']
    #allocation13 [shape = 'u8[65536]{0}', space=vmem, size = 0x10000, scoped, tag = 'output window, operand 0, single buffered']
    %16 = vsyncpa [#allocation3], 0
    %17 = vsyncpa [#allocation6], 0
    %18 = vsyncpa [#allocation9], 0
    %19 = vsyncpa [#allocation12], 0
    %20 = vsyncpa [#allocation4], 0
    // Predicated region
    $region2: #{tpu_custom_call.1} parent=1 // pred_check
      _
    $region3: #{tpu_custom_call.1} parent=1 // pred_check_branch
      %22 = sbr.rel (0) target = $region5
    $region4: #{tpu_custom_call.1} parent=1 // pred_region
      %s24 = ssub.s32 512, 512
      %25 = vsyncadd [#allocation3], %s24
      %s26 = sshll.u32 [#allocation2], 4
      %s27 = int_to_ptr.vmem [resolvable:$true] %s26
      %32 = dma.hbm_to_vmem [thread:$0]  %s0, 512, %s27, [#allocation3], 128, 128, 8
    $region5: #{tpu_custom_call.1} parent=1 // pred_fallthru
      _
    // Predicated region
    $region6: #{tpu_custom_call.1} parent=1 // pred_check
      _
    $region7: #{tpu_custom_call.1} parent=1 // pred_check_branch
      %34 = sbr.rel (0) target = $region9
    $region8: #{tpu_custom_call.1} parent=1 // pred_region
      %s36 = ssub.s32 256, 256
      %37 = vsyncadd [#allocation6], %s36
      %s38 = sshll.u32 [#allocation5], 4
      %s39 = int_to_ptr.vmem [resolvable:$true] %s38
      %44 = dma.hbm_to_vmem [thread:$0]  %s1, 256, %s39, [#allocation6], 64, 64, 4
    $region9: #{tpu_custom_call.1} parent=1 // pred_fallthru
      _
    // Predicated region
    $region10: #{tpu_custom_call.1} parent=1 // pred_check
      _
    $region11: #{tpu_custom_call.1} parent=1 // pred_check_branch
      %46 = sbr.rel (0) target = $region13
    $region12: #{tpu_custom_call.1} parent=1 // pred_region
      _
    $region13: #{tpu_custom_call.1} parent=1 // pred_fallthru
      _
    // Predicated region
    $region14: #{tpu_custom_call.1} parent=1 // pred_check
      _
    $region15: #{tpu_custom_call.1} parent=1 // pred_check_branch
      %48 = sbr.rel (0) target = $region17
    $region16: #{tpu_custom_call.1} parent=1 // pred_region
      %s50 = ssub.s32 256, 256
      %51 = vsyncadd [#allocation6], %s50
      %s52 = sshll.u32 [#allocation7], 4
      %s53 = int_to_ptr.vmem [resolvable:$true] %s52
      %58 = dma.hbm_to_vmem [thread:$0]  %s3, 256, %s53, [#allocation6], 64, 64, 4
    $region17: #{tpu_custom_call.1} parent=1 // pred_fallthru
      _
    // Predicated region
    $region18: #{tpu_custom_call.1} parent=1 // pred_check
      _
    $region19: #{tpu_custom_call.1} parent=1 // pred_check_branch
      %60 = sbr.rel (0) target = $region21
    $region20: #{tpu_custom_call.1} parent=1 // pred_region
      _
    $region21: #{tpu_custom_call.1} parent=1 // pred_fallthru
      _
    // Predicated region
    $region22: #{tpu_custom_call.1} parent=1 // pred_check
      _
    $region23: #{tpu_custom_call.1} parent=1 // pred_check_branch
      %62 = sbr.rel (0) target = $region25
    $region24: #{tpu_custom_call.1} parent=1 // pred_region
      %s64 = ssub.s32 512, 512
      %65 = vsyncadd [#allocation9], %s64
      %s66 = sshll.u32 [#allocation8], 4
      %s67 = int_to_ptr.vmem [resolvable:$true] %s66
      %72 = dma.hbm_to_vmem [thread:$0]  %s5, 512, %s67, [#allocation9], 64, 64, 4
    $region25: #{tpu_custom_call.1} parent=1 // pred_fallthru
      _
    // Predicated region
    $region26: #{tpu_custom_call.1} parent=1 // pred_check
      _
    $region27: #{tpu_custom_call.1} parent=1 // pred_check_branch
      %74 = sbr.rel (0) target = $region29
    $region28: #{tpu_custom_call.1} parent=1 // pred_region
      _
    $region29: #{tpu_custom_call.1} parent=1 // pred_fallthru
      _
    // Predicated region
    $region30: #{tpu_custom_call.1} parent=1 // pred_check
      _
    $region31: #{tpu_custom_call.1} parent=1 // pred_check_branch
      %76 = sbr.rel (0) target = $region33
    $region32: #{tpu_custom_call.1} parent=1 // pred_region
      %s78 = ssub.s32 512, 512
      %79 = vsyncadd [#allocation9], %s78
      %s80 = sshll.u32 [#allocation10], 4
      %s81 = int_to_ptr.vmem [resolvable:$true] %s80
      %86 = dma.hbm_to_vmem [thread:$0]  %s7, 512, %s81, [#allocation9], 64, 64, 4
    $region33: #{tpu_custom_call.1} parent=1 // pred_fallthru
      _
    // Predicated region
    $region34: #{tpu_custom_call.1} parent=1 // pred_check
      _
    $region35: #{tpu_custom_call.1} parent=1 // pred_check_branch
      %88 = sbr.rel (0) target = $region37
    $region36: #{tpu_custom_call.1} parent=1 // pred_region
      _
    $region37: #{tpu_custom_call.1} parent=1 // pred_fallthru
      _
    // Predicated region
    $region38: #{tpu_custom_call.1} parent=1 // pred_check
      _
    $region39: #{tpu_custom_call.1} parent=1 // pred_check_branch
      %90 = sbr.rel (0) target = $region41
    $region40: #{tpu_custom_call.1} parent=1 // pred_region
      %s92 = ssub.s32 2048, 2048
      %93 = vsyncadd [#allocation12], %s92
      %s94 = sshll.u32 [#allocation11], 4
      %s95 = int_to_ptr.vmem [resolvable:$true] %s94
      %100 = dma.hbm_to_vmem [thread:$0]  %s9, 2048, %s95, [#allocation12], 256, 256, 16
    $region41: #{tpu_custom_call.1} parent=1 // pred_fallthru
      _
    // Predicated region
    $region42: #{tpu_custom_call.1} parent=1 // pred_check
      _
    $region43: #{tpu_custom_call.1} parent=1 // pred_check_branch
      %102 = sbr.rel (0) target = $region45
    $region44: #{tpu_custom_call.1} parent=1 // pred_region
      _
    $region45: #{tpu_custom_call.1} parent=1 // pred_fallthru
      _
    // Predicated region
    $region46: #{tpu_custom_call.1} parent=1 // pred_check
      _
    $region47: #{tpu_custom_call.1} parent=1 // pred_check_branch
      %104 = sbr.rel (0) target = $region49
    $region48: #{tpu_custom_call.1} parent=1 // pred_region
      %105 = dma.done [#allocation3], 512
    $region49: #{tpu_custom_call.1} parent=1 // pred_fallthru
      _
    // Predicated region
    $region50: #{tpu_custom_call.1} parent=1 // pred_check
      _
    $region51: #{tpu_custom_call.1} parent=1 // pred_check_branch
      %107 = sbr.rel (0) target = $region53
    $region52: #{tpu_custom_call.1} parent=1 // pred_region
      %108 = dma.done [#allocation6], 256
    $region53: #{tpu_custom_call.1} parent=1 // pred_fallthru
      _
    // Predicated region
    $region54: #{tpu_custom_call.1} parent=1 // pred_check
      _
    $region55: #{tpu_custom_call.1} parent=1 // pred_check_branch
      %110 = sbr.rel (0) target = $region57
    $region56: #{tpu_custom_call.1} parent=1 // pred_region
      %111 = dma.done [#allocation6], 256
    $region57: #{tpu_custom_call.1} parent=1 // pred_fallthru
      _
    // Predicated region
    $region58: #{tpu_custom_call.1} parent=1 // pred_check
      _
    $region59: #{tpu_custom_call.1} parent=1 // pred_check_branch
      %113 = sbr.rel (0) target = $region61
    $region60: #{tpu_custom_call.1} parent=1 // pred_region
      %114 = dma.done [#allocation9], 512
    $region61: #{tpu_custom_call.1} parent=1 // pred_fallthru
      _
    // Predicated region
    $region62: #{tpu_custom_call.1} parent=1 // pred_check
      _
    $region63: #{tpu_custom_call.1} parent=1 // pred_check_branch
      %116 = sbr.rel (0) target = $region65
    $region64: #{tpu_custom_call.1} parent=1 // pred_region
      %117 = dma.done [#allocation9], 512
    $region65: #{tpu_custom_call.1} parent=1 // pred_fallthru
      _
    // Predicated region
    $region66: #{tpu_custom_call.1} parent=1 // pred_check
      _
    $region67: #{tpu_custom_call.1} parent=1 // pred_check_branch
      %119 = sbr.rel (0) target = $region69
    $region68: #{tpu_custom_call.1} parent=1 // pred_region
      %120 = dma.done [#allocation12], 2048
    $region69: #{tpu_custom_call.1} parent=1 // pred_fallthru
      _
    %v122 = vld [vmem:[#allocation2] sm:$0xff]
    %v123 = vld [vmem:[#allocation2 + $0x8] sm:$0xff]
    %v124 = vld [vmem:[#allocation2 + $0x10] sm:$0xff]
    %v125 = vld [vmem:[#allocation2 + $0x18] sm:$0xff]
    %v126 = vpack.c.bf16 %v123, %v122
    %v127 = vpack.c.bf16 %v125, %v124
    %v128 = vld [vmem:[#allocation5] sm:$0xf]
    %v129 = vld [vmem:[#allocation5 + $0x4] sm:$0xf]
    %v130 = vld [vmem:[#allocation5 + $0x8] sm:$0xf]
    %v131 = vld [vmem:[#allocation5 + $0xc] sm:$0xf]
    %v132 = vld [vmem:[%s2] sm:$0x1]
    %v134 = vlaneseq
    %v135 = vshrl.u32 %v134, 7
    %v136 = vsub.s32 0, %v135
    %v137 = vrot.slane %v132, %v136
    %v143 = vunpack.c.l.b16 %v128
    %v144 = vunpack.c.l.b16 %v129
    %v145 = vunpack.c.l.b16 %v130
    %v146 = vunpack.c.l.b16 %v131
    %v147 = vpack.c.b16 %v144, %v143
    %v148 = vpack.c.b16 %v146, %v145
    %vm151 = vcmask 261120
    %v153 = vsel %vm151, %v126, 0
    %v156 = vsel %vm151, %v127, 0
    %158 = vmatprep.subr.bf16.mxu0 0
    %159 = vmatpush1.bf16.msra.mxu0 0
    %160 = vmatprep.subr.bf16.mxu0 0
    %161 = vmatpush1.bf16.msra.mxu0 0
    %162 = vmatprep.subr.bf16.mxu0 0
    %163 = vmatpush1.bf16.msra.mxu0 0
    %164 = vmatprep.subr.bf16.mxu0 0
    %165 = vmatpush1.bf16.msra.mxu0 0
    %166 = vmatprep.subr.bf16.mxu0 0
    %167 = vmatpush1.bf16.msra.mxu0 0
    %168 = vmatprep.subr.bf16.mxu0 0
    %169 = vmatpush1.bf16.msra.mxu0 0
    %170 = vmatprep.subr.bf16.mxu0 0
    %171 = vmatpush1.bf16.msra.mxu0 %v148
    %172 = vmatprep.subr.bf16.mxu0 0
    %173 = vmatpush1.bf16.msra.mxu0 %v147
    %174 = vmatprep.subr.bf16.mxu0 0
    %175 = vmatpush2.bf16.msra.mxu0 0
    %176 = vmatprep.subr.bf16.mxu0 0
    %177 = vmatpush2.bf16.msra.mxu0 0
    %178 = vmatprep.subr.bf16.mxu0 0
    %179 = vmatpush2.bf16.msra.mxu0 0
    %180 = vmatprep.subr.bf16.mxu0 0
    %181 = vmatpush2.bf16.msra.mxu0 0
    %182 = vmatprep.subr.bf16.mxu0 0
    %183 = vmatpush2.bf16.msra.mxu0 0
    %184 = vmatprep.subr.bf16.mxu0 0
    %185 = vmatpush2.bf16.msra.mxu0 0
    %186 = vmatprep.subr.bf16.mxu0 0
    %187 = vmatpush2.bf16.msra.mxu0 0
    %188 = vmatprep.subr.bf16.mxu0 0
    %189 = vmatpush2.bf16.msra.mxu0 0
    %190 = vmatprep.mubr.bf16.mxu0 0
    %191 = vmatmul.mubr.bf16.gmra.mxu0 %v153
    %v192 = vpop.f32.mrf.mxu0
    %v193 = vadd.f32 %v137, %v192
    %v194 = vpop.f32.mrf.mxu0
    %v195 = vpop.f32.mrf.mxu0
    %v196 = vadd.f32 %v137, %v195
    %v197 = vpop.f32.mrf.mxu0
    %198 = vmatprep.mubr.bf16.mxu0 0
    %199 = vmatmul.mubr.bf16.gmra.mxu0 %v156
    %v200 = vpop.f32.mrf.mxu0
    %v201 = vadd.f32 %v137, %v200
    %v202 = vpop.f32.mrf.mxu0
    %v203 = vpop.f32.mrf.mxu0
    %v204 = vadd.f32 %v137, %v203
    %v205 = vpop.f32.mrf.mxu0
    %206 = vdwg.mxu0
    %v207 = vmax.f32 %v193, 0.0
    %v208 = vmax.f32 %v196, 0.0
    %v209 = vmax.f32 %v201, 0.0
    %v210 = vmax.f32 %v204, 0.0
    %v211 = vpack.c.bf16 %v208, %v207
    %v212 = vpack.c.bf16 %v210, %v209
    %v213 = vld [vmem:[#allocation7] sm:$0xf]
    %v214 = vld [vmem:[#allocation7 + $0x4] sm:$0xf]
    %v215 = vld [vmem:[#allocation7 + $0x8] sm:$0xf]
    %v216 = vld [vmem:[#allocation7 + $0xc] sm:$0xf]
    %v217 = vld [vmem:[%s4] sm:$0x1]
    %v219 = vlaneseq
    %v220 = vshrl.u32 %v219, 7
    %v221 = vsub.s32 0, %v220
    %v222 = vrot.slane %v217, %v221
    %v228 = vunpack.c.l.b16 %v213
    %v229 = vunpack.c.l.b16 %v214
    %v230 = vunpack.c.l.b16 %v215
    %v231 = vunpack.c.l.b16 %v216
    %v232 = vpack.c.b16 %v229, %v228
    %v233 = vpack.c.b16 %v231, %v230
    %v237 = vsel %vm151, %v211, 0
    %v240 = vsel %vm151, %v212, 0
    %242 = vmatprep.subr.bf16.mxu0 0
    %243 = vmatpush1.bf16.msra.mxu0 0
    %244 = vmatprep.subr.bf16.mxu0 0
    %245 = vmatpush1.bf16.msra.mxu0 0
    %246 = vmatprep.subr.bf16.mxu0 0
    %247 = vmatpush1.bf16.msra.mxu0 0
    %248 = vmatprep.subr.bf16.mxu0 0
    %249 = vmatpush1.bf16.msra.mxu0 0
    %250 = vmatprep.subr.bf16.mxu0 0
    %251 = vmatpush1.bf16.msra.mxu0 0
    %252 = vmatprep.subr.bf16.mxu0 0
    %253 = vmatpush1.bf16.msra.mxu0 0
    %254 = vmatprep.subr.bf16.mxu0 0
    %255 = vmatpush1.bf16.msra.mxu0 %v233
    %256 = vmatprep.subr.bf16.mxu0 0
    %257 = vmatpush1.bf16.msra.mxu0 %v232
    %258 = vmatprep.subr.bf16.mxu0 0
    %259 = vmatpush2.bf16.msra.mxu0 0
    %260 = vmatprep.subr.bf16.mxu0 0
    %261 = vmatpush2.bf16.msra.mxu0 0
    %262 = vmatprep.subr.bf16.mxu0 0
    %263 = vmatpush2.bf16.msra.mxu0 0
    %264 = vmatprep.subr.bf16.mxu0 0
    %265 = vmatpush2.bf16.msra.mxu0 0
    %266 = vmatprep.subr.bf16.mxu0 0
    %267 = vmatpush2.bf16.msra.mxu0 0
    %268 = vmatprep.subr.bf16.mxu0 0
    %269 = vmatpush2.bf16.msra.mxu0 0
    %270 = vmatprep.subr.bf16.mxu0 0
    %271 = vmatpush2.bf16.msra.mxu0 0
    %272 = vmatprep.subr.bf16.mxu0 0
    %273 = vmatpush2.bf16.msra.mxu0 0
    %274 = vmatprep.mubr.bf16.mxu0 0
    %275 = vmatmul.mubr.bf16.gmra.mxu0 %v237
    %v276 = vpop.f32.mrf.mxu0
    %v277 = vadd.f32 %v222, %v276
    %v278 = vpop.f32.mrf.mxu0
    %v279 = vpop.f32.mrf.mxu0
    %v280 = vadd.f32 %v222, %v279
    %v281 = vpop.f32.mrf.mxu0
    %282 = vmatprep.mubr.bf16.mxu0 0
    %283 = vmatmul.mubr.bf16.gmra.mxu0 %v240
    %v284 = vpop.f32.mrf.mxu0
    %v285 = vadd.f32 %v222, %v284
    %v286 = vpop.f32.mrf.mxu0
    %v287 = vpop.f32.mrf.mxu0
    %v288 = vadd.f32 %v222, %v287
    %v289 = vpop.f32.mrf.mxu0
    %290 = vdwg.mxu0
    %v291 = vmax.f32 %v277, 0.0
    %v292 = vmax.f32 %v280, 0.0
    %v293 = vmax.f32 %v285, 0.0
    %v294 = vmax.f32 %v288, 0.0
    %v295 = vpack.c.bf16 %v292, %v291
    %v296 = vpack.c.bf16 %v294, %v293
    %v297 = vld [vmem:[#allocation8] sm:$0xf]
    %v298 = vld [vmem:[#allocation8 + $0x4] sm:$0xf]
    %v299 = vld [vmem:[#allocation8 + $0x8] sm:$0xf]
    %v300 = vld [vmem:[#allocation8 + $0xc] sm:$0xf]
    %v301 = vld [vmem:[#allocation8 + $0x10] sm:$0xf]
    %v302 = vld [vmem:[#allocation8 + $0x14] sm:$0xf]
    %v303 = vld [vmem:[#allocation8 + $0x18] sm:$0xf]
    %v304 = vld [vmem:[#allocation8 + $0x1c] sm:$0xf]
    %v305 = vld [vmem:[%s6] sm:$0x1]
    %v307 = vlaneseq
    %v308 = vshrl.u32 %v307, 7
    %v309 = vsub.s32 0, %v308
    %v310 = vrot.slane %v305, %v309
    %v320 = vunpack.c.l.b16 %v297
    %v321 = vunpack.c.l.b16 %v298
    %v322 = vunpack.c.l.b16 %v299
    %v323 = vunpack.c.l.b16 %v300
    %v324 = vunpack.c.l.b16 %v301
    %v325 = vunpack.c.l.b16 %v302
    %v326 = vunpack.c.l.b16 %v303
    %v327 = vunpack.c.l.b16 %v304
    %v328 = vpack.c.b16 %v321, %v320
    %v329 = vpack.c.b16 %v323, %v322
    %v330 = vpack.c.b16 %v325, %v324
    %v331 = vpack.c.b16 %v327, %v326
    %vm336 = vcmask 523264
    %v338 = vsel %vm336, %v295, 0
    %v341 = vsel %vm336, %v296, 0
    %343 = vmatprep.subr.bf16.mxu0 0
    %344 = vmatpush1.bf16.msra.mxu0 0
    %345 = vmatprep.subr.bf16.mxu0 0
    %346 = vmatpush1.bf16.msra.mxu0 0
    %347 = vmatprep.subr.bf16.mxu0 0
    %348 = vmatpush1.bf16.msra.mxu0 0
    %349 = vmatprep.subr.bf16.mxu0 0
    %350 = vmatpush1.bf16.msra.mxu0 0
    %351 = vmatprep.subr.bf16.mxu0 0
    %352 = vmatpush1.bf16.msra.mxu0 %v331
    %353 = vmatprep.subr.bf16.mxu0 0
    %354 = vmatpush1.bf16.msra.mxu0 %v330
    %355 = vmatprep.subr.bf16.mxu0 0
    %356 = vmatpush1.bf16.msra.mxu0 %v329
    %357 = vmatprep.subr.bf16.mxu0 0
    %358 = vmatpush1.bf16.msra.mxu0 %v328
    %359 = vmatprep.subr.bf16.mxu0 0
    %360 = vmatpush2.bf16.msra.mxu0 0
    %361 = vmatprep.subr.bf16.mxu0 0
    %362 = vmatpush2.bf16.msra.mxu0 0
    %363 = vmatprep.subr.bf16.mxu0 0
    %364 = vmatpush2.bf16.msra.mxu0 0
    %365 = vmatprep.subr.bf16.mxu0 0
    %366 = vmatpush2.bf16.msra.mxu0 0
    %367 = vmatprep.subr.bf16.mxu0 0
    %368 = vmatpush2.bf16.msra.mxu0 0
    %369 = vmatprep.subr.bf16.mxu0 0
    %370 = vmatpush2.bf16.msra.mxu0 0
    %371 = vmatprep.subr.bf16.mxu0 0
    %372 = vmatpush2.bf16.msra.mxu0 0
    %373 = vmatprep.subr.bf16.mxu0 0
    %374 = vmatpush2.bf16.msra.mxu0 0
    %375 = vmatprep.mubr.bf16.mxu0 0
    %376 = vmatmul.mubr.bf16.gmra.mxu0 %v338
    %v377 = vpop.f32.mrf.mxu0
    %v378 = vadd.f32 %v310, %v377
    %v379 = vpop.f32.mrf.mxu0
    %v380 = vpop.f32.mrf.mxu0
    %v381 = vadd.f32 %v310, %v380
    %v382 = vpop.f32.mrf.mxu0
    %383 = vmatprep.mubr.bf16.mxu0 0
    %384 = vmatmul.mubr.bf16.gmra.mxu0 %v341
    %v385 = vpop.f32.mrf.mxu0
    %v386 = vadd.f32 %v310, %v385
    %v387 = vpop.f32.mrf.mxu0
    %v388 = vpop.f32.mrf.mxu0
    %v389 = vadd.f32 %v310, %v388
    %v390 = vpop.f32.mrf.mxu0
    %391 = vdwg.mxu0
    %v392 = vmax.f32 %v378, 0.0
    %v393 = vmax.f32 %v381, 0.0
    %v394 = vmax.f32 %v386, 0.0
    %v395 = vmax.f32 %v389, 0.0
    %v396 = vpack.c.bf16 %v393, %v392
    %v397 = vpack.c.bf16 %v395, %v394
    %v398 = vld [vmem:[#allocation10] sm:$0xf]
    %v399 = vld [vmem:[#allocation10 + $0x4] sm:$0xf]
    %v400 = vld [vmem:[#allocation10 + $0x8] sm:$0xf]
    %v401 = vld [vmem:[#allocation10 + $0xc] sm:$0xf]
    %v402 = vld [vmem:[#allocation10 + $0x10] sm:$0xf]
    %v403 = vld [vmem:[#allocation10 + $0x14] sm:$0xf]
    %v404 = vld [vmem:[#allocation10 + $0x18] sm:$0xf]
    %v405 = vld [vmem:[#allocation10 + $0x1c] sm:$0xf]
    %v406 = vld [vmem:[%s8] sm:$0x1]
    %v408 = vlaneseq
    %v409 = vshrl.u32 %v408, 7
    %v410 = vsub.s32 0, %v409
    %v411 = vrot.slane %v406, %v410
    %v421 = vunpack.c.l.b16 %v398
    %v422 = vunpack.c.l.b16 %v399
    %v423 = vunpack.c.l.b16 %v400
    %v424 = vunpack.c.l.b16 %v401
    %v425 = vunpack.c.l.b16 %v402
    %v426 = vunpack.c.l.b16 %v403
    %v427 = vunpack.c.l.b16 %v404
    %v428 = vunpack.c.l.b16 %v405
    %v429 = vpack.c.b16 %v422, %v421
    %v430 = vpack.c.b16 %v424, %v423
    %v431 = vpack.c.b16 %v426, %v425
    %v432 = vpack.c.b16 %v428, %v427
    %v438 = vsel %vm336, %v396, 0
    %v441 = vsel %vm336, %v397, 0
    %443 = vmatprep.subr.bf16.mxu0 0
    %444 = vmatpush1.bf16.msra.mxu0 0
    %445 = vmatprep.subr.bf16.mxu0 0
    %446 = vmatpush1.bf16.msra.mxu0 0
    %447 = vmatprep.subr.bf16.mxu0 0
    %448 = vmatpush1.bf16.msra.mxu0 0
    %449 = vmatprep.subr.bf16.mxu0 0
    %450 = vmatpush1.bf16.msra.mxu0 0
    %451 = vmatprep.subr.bf16.mxu0 0
    %452 = vmatpush1.bf16.msra.mxu0 %v432
    %453 = vmatprep.subr.bf16.mxu0 0
    %454 = vmatpush1.bf16.msra.mxu0 %v431
    %455 = vmatprep.subr.bf16.mxu0 0
    %456 = vmatpush1.bf16.msra.mxu0 %v430
    %457 = vmatprep.subr.bf16.mxu0 0
    %458 = vmatpush1.bf16.msra.mxu0 %v429
    %459 = vmatprep.subr.bf16.mxu0 0
    %460 = vmatpush2.bf16.msra.mxu0 0
    %461 = vmatprep.subr.bf16.mxu0 0
    %462 = vmatpush2.bf16.msra.mxu0 0
    %463 = vmatprep.subr.bf16.mxu0 0
    %464 = vmatpush2.bf16.msra.mxu0 0
    %465 = vmatprep.subr.bf16.mxu0 0
    %466 = vmatpush2.bf16.msra.mxu0 0
    %467 = vmatprep.subr.bf16.mxu0 0
    %468 = vmatpush2.bf16.msra.mxu0 0
    %469 = vmatprep.subr.bf16.mxu0 0
    %470 = vmatpush2.bf16.msra.mxu0 0
    %471 = vmatprep.subr.bf16.mxu0 0
    %472 = vmatpush2.bf16.msra.mxu0 0
    %473 = vmatprep.subr.bf16.mxu0 0
    %474 = vmatpush2.bf16.msra.mxu0 0
    %475 = vmatprep.mubr.bf16.mxu0 0
    %476 = vmatmul.mubr.bf16.gmra.mxu0 %v438
    %v477 = vpop.f32.mrf.mxu0
    %v478 = vadd.f32 %v411, %v477
    %v479 = vpop.f32.mrf.mxu0
    %v480 = vpop.f32.mrf.mxu0
    %v481 = vadd.f32 %v411, %v480
    %v482 = vpop.f32.mrf.mxu0
    %483 = vmatprep.mubr.bf16.mxu0 0
    %484 = vmatmul.mubr.bf16.gmra.mxu0 %v441
    %v485 = vpop.f32.mrf.mxu0
    %v486 = vadd.f32 %v411, %v485
    %v487 = vpop.f32.mrf.mxu0
    %v488 = vpop.f32.mrf.mxu0
    %v489 = vadd.f32 %v411, %v488
    %v490 = vpop.f32.mrf.mxu0
    %491 = vdwg.mxu0
    %v492 = vld [vmem:[#allocation11] sm:$0xff]
    %v493 = vld [vmem:[#allocation11 + $0x8] sm:$0xff]
    %v494 = vld [vmem:[#allocation11 + $0x10] sm:$0xff]
    %v495 = vld [vmem:[#allocation11 + $0x18] sm:$0xff]
    %v496 = vld [vmem:[#allocation11 + $0x20] sm:$0xff]
    %v497 = vld [vmem:[#allocation11 + $0x28] sm:$0xff]
    %v498 = vld [vmem:[#allocation11 + $0x30] sm:$0xff]
    %v499 = vld [vmem:[#allocation11 + $0x38] sm:$0xff]
    %v500 = vld [vmem:[#allocation11 + $0x40] sm:$0xff]
    %v501 = vld [vmem:[#allocation11 + $0x48] sm:$0xff]
    %v502 = vld [vmem:[#allocation11 + $0x50] sm:$0xff]
    %v503 = vld [vmem:[#allocation11 + $0x58] sm:$0xff]
    %v504 = vld [vmem:[#allocation11 + $0x60] sm:$0xff]
    %v505 = vld [vmem:[#allocation11 + $0x68] sm:$0xff]
    %v506 = vld [vmem:[#allocation11 + $0x70] sm:$0xff]
    %v507 = vld [vmem:[#allocation11 + $0x78] sm:$0xff]
    %v508 = vld [vmem:[%s10] sm:$0xf]
    %v510 = vlaneseq
    %v511 = vshrl.u32 %v510, 7
    %v512 = vsub.s32 0, %v511
    %v513 = vrot.slane %v508, %v512
    %v514 = vlaneseq
    %v515 = vshrl.u32 %v514, 7
    %v516 = vsub.s32 1, %v515
    %v517 = vrot.slane %v508, %v516
    %v518 = vlaneseq
    %v519 = vshrl.u32 %v518, 7
    %v520 = vsub.s32 2, %v519
    %v521 = vrot.slane %v508, %v520
    %v522 = vlaneseq
    %v523 = vshrl.u32 %v522, 7
    %v524 = vsub.s32 3, %v523
    %v525 = vrot.slane %v508, %v524
    %532 = vrot.lane.b32.xlu0 %v396, 64
    %v533 = vpop.permute.xlu0 %532
    %534 = vrot.lane.b32.xlu0 %v397, 64
    %v535 = vpop.permute.xlu0 %534
    %v552 = vunpack.c.l.b16 %v492
    %v553 = vunpack.c.h.b16 %v492
    %v554 = vunpack.c.l.b16 %v493
    %v555 = vunpack.c.h.b16 %v493
    %v556 = vunpack.c.l.b16 %v494
    %v557 = vunpack.c.h.b16 %v494
    %v558 = vunpack.c.l.b16 %v495
    %v559 = vunpack.c.h.b16 %v495
    %v560 = vunpack.c.l.b16 %v496
    %v561 = vunpack.c.h.b16 %v496
    %v562 = vunpack.c.l.b16 %v497
    %v563 = vunpack.c.h.b16 %v497
    %v564 = vunpack.c.l.b16 %v498
    %v565 = vunpack.c.h.b16 %v498
    %v566 = vunpack.c.l.b16 %v499
    %v567 = vunpack.c.h.b16 %v499
    %v568 = vunpack.c.l.b16 %v500
    %v569 = vunpack.c.h.b16 %v500
    %v570 = vunpack.c.l.b16 %v501
    %v571 = vunpack.c.h.b16 %v501
    %v572 = vunpack.c.l.b16 %v502
    %v573 = vunpack.c.h.b16 %v502
    %v574 = vunpack.c.l.b16 %v503
    %v575 = vunpack.c.h.b16 %v503
    %v576 = vunpack.c.l.b16 %v504
    %v577 = vunpack.c.h.b16 %v504
    %v578 = vunpack.c.l.b16 %v505
    %v579 = vunpack.c.h.b16 %v505
    %v580 = vunpack.c.l.b16 %v506
    %v581 = vunpack.c.h.b16 %v506
    %v582 = vunpack.c.l.b16 %v507
    %v583 = vunpack.c.h.b16 %v507
    %v584 = vpack.c.b16 %v556, %v552
    %v585 = vpack.c.b16 %v557, %v553
    %v586 = vpack.c.b16 %v558, %v554
    %v587 = vpack.c.b16 %v559, %v555
    %v588 = vpack.c.b16 %v564, %v560
    %v589 = vpack.c.b16 %v565, %v561
    %v590 = vpack.c.b16 %v566, %v562
    %v591 = vpack.c.b16 %v567, %v563
    %v592 = vpack.c.b16 %v572, %v568
    %v593 = vpack.c.b16 %v573, %v569
    %v594 = vpack.c.b16 %v574, %v570
    %v595 = vpack.c.b16 %v575, %v571
    %v596 = vpack.c.b16 %v580, %v576
    %v597 = vpack.c.b16 %v581, %v577
    %v598 = vpack.c.b16 %v582, %v578
    %v599 = vpack.c.b16 %v583, %v579
    %v617 = vsel %vm336, %v533, 0
    %v620 = vsel %vm336, %v535, 0
    %622 = vmatprep.subr.bf16.mxu0 0
    %623 = vmatpush1.bf16.msra.mxu0 0
    %624 = vmatprep.subr.bf16.mxu0 0
    %625 = vmatpush1.bf16.msra.mxu0 0
    %626 = vmatprep.subr.bf16.mxu0 0
    %627 = vmatpush1.bf16.msra.mxu0 0
    %628 = vmatprep.subr.bf16.mxu0 0
    %629 = vmatpush1.bf16.msra.mxu0 0
    %630 = vmatprep.subr.bf16.mxu0 %v597
    %631 = vmatpush1.bf16.msra.mxu0 %v596
    %632 = vmatprep.subr.bf16.mxu0 %v593
    %633 = vmatpush1.bf16.msra.mxu0 %v592
    %634 = vmatprep.subr.bf16.mxu0 %v589
    %635 = vmatpush1.bf16.msra.mxu0 %v588
    %636 = vmatprep.subr.bf16.mxu0 %v585
    %637 = vmatpush1.bf16.msra.mxu0 %v584
    %638 = vmatprep.subr.bf16.mxu0 0
    %639 = vmatpush2.bf16.msra.mxu0 0
    %640 = vmatprep.subr.bf16.mxu0 0
    %641 = vmatpush2.bf16.msra.mxu0 0
    %642 = vmatprep.subr.bf16.mxu0 0
    %643 = vmatpush2.bf16.msra.mxu0 0
    %644 = vmatprep.subr.bf16.mxu0 0
    %645 = vmatpush2.bf16.msra.mxu0 0
    %646 = vmatprep.subr.bf16.mxu0 0
    %647 = vmatpush2.bf16.msra.mxu0 0
    %648 = vmatprep.subr.bf16.mxu0 0
    %649 = vmatpush2.bf16.msra.mxu0 0
    %650 = vmatprep.subr.bf16.mxu0 0
    %651 = vmatpush2.bf16.msra.mxu0 0
    %652 = vmatprep.subr.bf16.mxu0 0
    %653 = vmatpush2.bf16.msra.mxu0 0
    %654 = vmatprep.mubr.bf16.mxu0 0
    %655 = vmatmul.mubr.bf16.gmra.mxu0 %v617
    %v656 = vpop.f32.mrf.mxu0
    %v657 = vadd.f32 %v513, %v656
    %v658 = vpop.f32.mrf.mxu0
    %v659 = vadd.f32 %v517, %v658
    %v660 = vpop.f32.mrf.mxu0
    %v661 = vadd.f32 %v513, %v660
    %v662 = vpop.f32.mrf.mxu0
    %v663 = vadd.f32 %v517, %v662
    %664 = vmatprep.mubr.bf16.mxu0 0
    %665 = vmatmul.mubr.bf16.gmra.mxu0 %v620
    %v666 = vpop.f32.mrf.mxu0
    %v667 = vadd.f32 %v513, %v666
    %v668 = vpop.f32.mrf.mxu0
    %v669 = vadd.f32 %v517, %v668
    %v670 = vpop.f32.mrf.mxu0
    %v671 = vadd.f32 %v513, %v670
    %v672 = vpop.f32.mrf.mxu0
    %v673 = vadd.f32 %v517, %v672
    %674 = vdwg.mxu0
    %675 = vmatprep.subr.bf16.mxu0 0
    %676 = vmatpush1.bf16.msra.mxu0 0
    %677 = vmatprep.subr.bf16.mxu0 0
    %678 = vmatpush1.bf16.msra.mxu0 0
    %679 = vmatprep.subr.bf16.mxu0 0
    %680 = vmatpush1.bf16.msra.mxu0 0
    %681 = vmatprep.subr.bf16.mxu0 0
    %682 = vmatpush1.bf16.msra.mxu0 0
    %683 = vmatprep.subr.bf16.mxu0 %v599
    %684 = vmatpush1.bf16.msra.mxu0 %v598
    %685 = vmatprep.subr.bf16.mxu0 %v595
    %686 = vmatpush1.bf16.msra.mxu0 %v594
    %687 = vmatprep.subr.bf16.mxu0 %v591
    %688 = vmatpush1.bf16.msra.mxu0 %v590
    %689 = vmatprep.subr.bf16.mxu0 %v587
    %690 = vmatpush1.bf16.msra.mxu0 %v586
    %691 = vmatprep.subr.bf16.mxu0 0
    %692 = vmatpush2.bf16.msra.mxu0 0
    %693 = vmatprep.subr.bf16.mxu0 0
    %694 = vmatpush2.bf16.msra.mxu0 0
    %695 = vmatprep.subr.bf16.mxu0 0
    %696 = vmatpush2.bf16.msra.mxu0 0
    %697 = vmatprep.subr.bf16.mxu0 0
    %698 = vmatpush2.bf16.msra.mxu0 0
    %699 = vmatprep.subr.bf16.mxu0 0
    %700 = vmatpush2.bf16.msra.mxu0 0
    %701 = vmatprep.subr.bf16.mxu0 0
    %702 = vmatpush2.bf16.msra.mxu0 0
    %703 = vmatprep.subr.bf16.mxu0 0
    %704 = vmatpush2.bf16.msra.mxu0 0
    %705 = vmatprep.subr.bf16.mxu0 0
    %706 = vmatpush2.bf16.msra.mxu0 0
    %707 = vmatprep.mubr.bf16.mxu0 0
    %708 = vmatmul.mubr.bf16.gmra.mxu0 %v617
    %v709 = vpop.f32.mrf.mxu0
    %v710 = vadd.f32 %v521, %v709
    %v711 = vpop.f32.mrf.mxu0
    %v712 = vadd.f32 %v525, %v711
    %v713 = vpop.f32.mrf.mxu0
    %v714 = vadd.f32 %v521, %v713
    %v715 = vpop.f32.mrf.mxu0
    %v716 = vadd.f32 %v525, %v715
    %717 = vmatprep.mubr.bf16.mxu0 0
    %718 = vmatmul.mubr.bf16.gmra.mxu0 %v620
    %v719 = vpop.f32.mrf.mxu0
    %v720 = vadd.f32 %v521, %v719
    %v721 = vpop.f32.mrf.mxu0
    %v722 = vadd.f32 %v525, %v721
    %v723 = vpop.f32.mrf.mxu0
    %v724 = vadd.f32 %v521, %v723
    %v725 = vpop.f32.mrf.mxu0
    %v726 = vadd.f32 %v525, %v725
    %727 = vdwg.mxu0
    %v728 = vadd.f32 %v657, %v659
    %v729 = vadd.f32 %v661, %v663
    %v730 = vadd.f32 %v667, %v669
    %v731 = vadd.f32 %v671, %v673
    %v732 = vadd.f32 %v728, %v710
    %v733 = vadd.f32 %v729, %v714
    %v734 = vadd.f32 %v730, %v720
    %v735 = vadd.f32 %v731, %v724
    %v736 = vadd.f32 %v732, %v712
    %v737 = vadd.f32 %v733, %v716
    %v738 = vadd.f32 %v734, %v722
    %v739 = vadd.f32 %v735, %v726
    %v740 = vmul.f32 %v736, 0.25
    %v741 = vmul.f32 %v737, 0.25
    %v742 = vmul.f32 %v738, 0.25
    %v743 = vmul.f32 %v739, 0.25
    %v744 = vsub.f32 %v478, %v740
    %v745 = vsub.f32 %v481, %v741
    %v746 = vsub.f32 %v486, %v742
    %v747 = vsub.f32 %v489, %v743
    %v748 = vadd.f32 %v744, %v657
    %v749 = vadd.f32 %v745, %v661
    %v750 = vadd.f32 %v746, %v667
    %v751 = vadd.f32 %v747, %v671
    %752 = vmax.xlane.f32.xlu0 %v748
    %v753 = vpop.xlane.xlu0 %752
    %754 = vmax.xlane.f32.xlu0 %v749
    %v755 = vpop.xlane.xlu0 %754
    %756 = vmax.xlane.f32.xlu0 %v750
    %v757 = vpop.xlane.xlu0 %756
    %758 = vmax.xlane.f32.xlu0 %v751
    %v759 = vpop.xlane.xlu0 %758
    %v760 = vsub.f32 %v748, %v753
    %v761 = vsub.f32 %v749, %v755
    %v762 = vsub.f32 %v750, %v757
    %v763 = vsub.f32 %v751, %v759
    %v764 = vmul.f32 %v760, 1.442695
    %v765 = vpow.pop %v764
    %v766 = vmul.f32 %v761, 1.442695
    %v767 = vpow.pop %v766
    %v768 = vmul.f32 %v762, 1.442695
    %v769 = vpow.pop %v768
    %v770 = vmul.f32 %v763, 1.442695
    %v771 = vpow.pop %v770
    %772 = vadd.xlane.f32.xlu0 %v765
    %v773 = vpop.xlane.xlu0 %772
    %774 = vadd.xlane.f32.xlu0 %v767
    %v775 = vpop.xlane.xlu0 %774
    %776 = vadd.xlane.f32.xlu0 %v769
    %v777 = vpop.xlane.xlu0 %776
    %778 = vadd.xlane.f32.xlu0 %v771
    %v779 = vpop.xlane.xlu0 %778
    %v780 = vrcp.pop %v773
    %v781 = vmul.f32 %v765, %v780
    %v782 = vrcp.pop %v775
    %v783 = vmul.f32 %v767, %v782
    %v784 = vrcp.pop %v777
    %v785 = vmul.f32 %v769, %v784
    %v786 = vrcp.pop %v779
    %v787 = vmul.f32 %v771, %v786
    %v788 = vadd.f32 %v744, %v659
    %v789 = vadd.f32 %v745, %v663
    %v790 = vadd.f32 %v746, %v669
    %v791 = vadd.f32 %v747, %v673
    %792 = vmax.xlane.f32.xlu0 %v788
    %v793 = vpop.xlane.xlu0 %792
    %794 = vmax.xlane.f32.xlu0 %v789
    %v795 = vpop.xlane.xlu0 %794
    %796 = vmax.xlane.f32.xlu0 %v790
    %v797 = vpop.xlane.xlu0 %796
    %798 = vmax.xlane.f32.xlu0 %v791
    %v799 = vpop.xlane.xlu0 %798
    %v800 = vsub.f32 %v788, %v793
    %v801 = vsub.f32 %v789, %v795
    %v802 = vsub.f32 %v790, %v797
    %v803 = vsub.f32 %v791, %v799
    %v804 = vmul.f32 %v800, 1.442695
    %v805 = vpow.pop %v804
    %v806 = vmul.f32 %v801, 1.442695
    %v807 = vpow.pop %v806
    %v808 = vmul.f32 %v802, 1.442695
    %v809 = vpow.pop %v808
    %v810 = vmul.f32 %v803, 1.442695
    %v811 = vpow.pop %v810
    %812 = vadd.xlane.f32.xlu0 %v805
    %v813 = vpop.xlane.xlu0 %812
    %814 = vadd.xlane.f32.xlu0 %v807
    %v815 = vpop.xlane.xlu0 %814
    %816 = vadd.xlane.f32.xlu0 %v809
    %v817 = vpop.xlane.xlu0 %816
    %818 = vadd.xlane.f32.xlu0 %v811
    %v819 = vpop.xlane.xlu0 %818
    %v820 = vrcp.pop %v813
    %v821 = vmul.f32 %v805, %v820
    %v822 = vrcp.pop %v815
    %v823 = vmul.f32 %v807, %v822
    %v824 = vrcp.pop %v817
    %v825 = vmul.f32 %v809, %v824
    %v826 = vrcp.pop %v819
    %v827 = vmul.f32 %v811, %v826
    %v828 = vadd.f32 %v744, %v710
    %v829 = vadd.f32 %v745, %v714
    %v830 = vadd.f32 %v746, %v720
    %v831 = vadd.f32 %v747, %v724
    %832 = vmax.xlane.f32.xlu0 %v828
    %v833 = vpop.xlane.xlu0 %832
    %834 = vmax.xlane.f32.xlu0 %v829
    %v835 = vpop.xlane.xlu0 %834
    %836 = vmax.xlane.f32.xlu0 %v830
    %v837 = vpop.xlane.xlu0 %836
    %838 = vmax.xlane.f32.xlu0 %v831
    %v839 = vpop.xlane.xlu0 %838
    %v840 = vsub.f32 %v828, %v833
    %v841 = vsub.f32 %v829, %v835
    %v842 = vsub.f32 %v830, %v837
    %v843 = vsub.f32 %v831, %v839
    %v844 = vmul.f32 %v840, 1.442695
    %v845 = vpow.pop %v844
    %v846 = vmul.f32 %v841, 1.442695
    %v847 = vpow.pop %v846
    %v848 = vmul.f32 %v842, 1.442695
    %v849 = vpow.pop %v848
    %v850 = vmul.f32 %v843, 1.442695
    %v851 = vpow.pop %v850
    %852 = vadd.xlane.f32.xlu0 %v845
    %v853 = vpop.xlane.xlu0 %852
    %854 = vadd.xlane.f32.xlu0 %v847
    %v855 = vpop.xlane.xlu0 %854
    %856 = vadd.xlane.f32.xlu0 %v849
    %v857 = vpop.xlane.xlu0 %856
    %858 = vadd.xlane.f32.xlu0 %v851
    %v859 = vpop.xlane.xlu0 %858
    %v860 = vrcp.pop %v853
    %v861 = vmul.f32 %v845, %v860
    %v862 = vrcp.pop %v855
    %v863 = vmul.f32 %v847, %v862
    %v864 = vrcp.pop %v857
    %v865 = vmul.f32 %v849, %v864
    %v866 = vrcp.pop %v859
    %v867 = vmul.f32 %v851, %v866
    %v868 = vadd.f32 %v744, %v712
    %v869 = vadd.f32 %v745, %v716
    %v870 = vadd.f32 %v746, %v722
    %v871 = vadd.f32 %v747, %v726
    %872 = vmax.xlane.f32.xlu0 %v868
    %v873 = vpop.xlane.xlu0 %872
    %874 = vmax.xlane.f32.xlu0 %v869
    %v875 = vpop.xlane.xlu0 %874
    %876 = vmax.xlane.f32.xlu0 %v870
    %v877 = vpop.xlane.xlu0 %876
    %878 = vmax.xlane.f32.xlu0 %v871
    %v879 = vpop.xlane.xlu0 %878
    %v880 = vsub.f32 %v868, %v873
    %v881 = vsub.f32 %v869, %v875
    %v882 = vsub.f32 %v870, %v877
    %v883 = vsub.f32 %v871, %v879
    %v884 = vmul.f32 %v880, 1.442695
    %v885 = vpow.pop %v884
    %v886 = vmul.f32 %v881, 1.442695
    %v887 = vpow.pop %v886
    %v888 = vmul.f32 %v882, 1.442695
    %v889 = vpow.pop %v888
    %v890 = vmul.f32 %v883, 1.442695
    %v891 = vpow.pop %v890
    %892 = vadd.xlane.f32.xlu0 %v885
    %v893 = vpop.xlane.xlu0 %892
    %894 = vadd.xlane.f32.xlu0 %v887
    %v895 = vpop.xlane.xlu0 %894
    %896 = vadd.xlane.f32.xlu0 %v889
    %v897 = vpop.xlane.xlu0 %896
    %898 = vadd.xlane.f32.xlu0 %v891
    %v899 = vpop.xlane.xlu0 %898
    %v900 = vrcp.pop %v893
    %v901 = vmul.f32 %v885, %v900
    %v902 = vrcp.pop %v895
    %v903 = vmul.f32 %v887, %v902
    %v904 = vrcp.pop %v897
    %v905 = vmul.f32 %v889, %v904
    %v906 = vrcp.pop %v899
    %v907 = vmul.f32 %v891, %v906
    %908 = vst [vmem:[#allocation13] sm:$0xff] %v781
    %909 = vst [vmem:[#allocation13 + $0x8] sm:$0xff] %v821
    %910 = vst [vmem:[#allocation13 + $0x10] sm:$0xff] %v861
    %911 = vst [vmem:[#allocation13 + $0x18] sm:$0xff] %v901
    %912 = vst [vmem:[#allocation13 + $0x20] sm:$0xff] %v783
    %913 = vst [vmem:[#allocation13 + $0x28] sm:$0xff] %v823
    %914 = vst [vmem:[#allocation13 + $0x30] sm:$0xff] %v863
    %915 = vst [vmem:[#allocation13 + $0x38] sm:$0xff] %v903
    %916 = vst [vmem:[#allocation13 + $0x40] sm:$0xff] %v785
    %917 = vst [vmem:[#allocation13 + $0x48] sm:$0xff] %v825
    %918 = vst [vmem:[#allocation13 + $0x50] sm:$0xff] %v865
    %919 = vst [vmem:[#allocation13 + $0x58] sm:$0xff] %v905
    %920 = vst [vmem:[#allocation13 + $0x60] sm:$0xff] %v787
    %921 = vst [vmem:[#allocation13 + $0x68] sm:$0xff] %v827
    %922 = vst [vmem:[#allocation13 + $0x70] sm:$0xff] %v867
    %923 = vst [vmem:[#allocation13 + $0x78] sm:$0xff] %v907
    // Predicated region
    $region70: #{tpu_custom_call.1} parent=1 // pred_check
      _
    $region71: #{tpu_custom_call.1} parent=1 // pred_check_branch
      %925 = sbr.rel (0) target = $region73
    $region72: #{tpu_custom_call.1} parent=1 // pred_region
      %s927 = ssub.s32 2048, 2048
      %928 = vsyncadd [#allocation4], %s927
      %s929 = sshll.u32 [#allocation13], 4
      %s930 = int_to_ptr.vmem [resolvable:$true] %s929
      %935 = dma.vmem_to_hbm [thread:$0]  %s930, 2048, %s11, [#allocation4], 512, 512, 32
    $region73: #{tpu_custom_call.1} parent=1 // pred_fallthru
      _
    // Predicated region
    $region74: #{tpu_custom_call.1} parent=1 // pred_check
      _
    $region75: #{tpu_custom_call.1} parent=1 // pred_check_branch
      %937 = sbr.rel (0) target = $region77
    $region76: #{tpu_custom_call.1} parent=1 // pred_region
      %938 = dma.done [#allocation4], 2048
    $region77: #{tpu_custom_call.1} parent=1 // pred_fallthru
      _
    %939 = vsyncpa [#allocation3], 1
    %940 = vsyncpa [#allocation6], 1
    %941 = vsyncpa [#allocation9], 1
    %942 = vsyncpa [#allocation12], 1
    %943 = vsyncpa [#allocation4], 1

</llo_original>
